<compile_context>
chip_gen: v5e
topology: v5e:2x2
jax: 0.10.0
libtpu: 0.0.40
codegen_flags: <defaults>
</compile_context>

<pallas_src>
import functools

import jax
import jax.numpy as jnp
from jax.experimental import pallas as pl
from jax.experimental.pallas import tpu as pltpu

IN_DIM = 36
OUT_DIM = 24
# Batch tile: f32 inputs double-buffered = 2 inputs x 2 bufs x 8192*36*4 B
# ~= 4.6 MiB, bf16 output bufs ~= 0.8 MiB -> safe under v5e's 16 MiB default
# scoped VMEM and trivially under v6e/v7x limits.
TB_MAX = 8192


def dbl_kernel(fx_ref, fi_ref, w1_ref, b1_ref, w2_ref, b2_ref, out_ref):
    # Two tiny MXU pushes (K=36, N=24), f32 accumulate; bias + tanh in f32
    # (tanh on the EUP slot), Hadamard on the VPU. The op is HBM-bound, so the
    # extra vmatmul vs. a fused block-diagonal push costs nothing.
    zx = jnp.tanh(
        jnp.dot(fx_ref[...], w1_ref[...], preferred_element_type=jnp.float32)
        + b1_ref[...])
    zi = jnp.tanh(
        jnp.dot(fi_ref[...], w2_ref[...], preferred_element_type=jnp.float32)
        + b2_ref[...])
    out_ref[...] = (zx * zi).astype(out_ref.dtype)
    # TODO(synk): lane-dense output re-layout (view (B,24) as (B//k, 24*k))
    # only if profiling still shows a store-side wall-minus-compute gap; the
    # output is ~25% of HBM traffic here, so measure before committing.


@functools.partial(jax.jit, static_argnames=("out_dtype",))
def my_dbl(fx, fi, w1, b1, w2, b2, out_dtype=jnp.bfloat16):
    """fx, fi: (B, 36) f32; w1, w2: (36, 24) laid out (in, out); b1, b2: (24,)."""
    B = fx.shape[0]
    b1_2d = b1.reshape(1, OUT_DIM).astype(jnp.float32)
    b2_2d = b2.reshape(1, OUT_DIM).astype(jnp.float32)

    # No pad / slice: for small B the block equals the full batch dim (legal
    # for any B); for large B use an 8-aligned TB_MAX tile and let Pallas mask
    # the partial trailing block's writeback.
    tb = B if B <= TB_MAX else TB_MAX
    grid = (pl.cdiv(B, tb),)

    return pl.pallas_call(
        dbl_kernel,
        out_shape=jax.ShapeDtypeStruct((B, OUT_DIM), out_dtype),
        grid=grid,
        in_specs=[
            pl.BlockSpec((tb, IN_DIM), lambda i: (i, 0)),        # fx streams
            pl.BlockSpec((tb, IN_DIM), lambda i: (i, 0)),        # fi streams
            pl.BlockSpec((IN_DIM, OUT_DIM), lambda i: (0, 0)),   # w1 VMEM-resident
            pl.BlockSpec((1, OUT_DIM), lambda i: (0, 0)),        # b1 VMEM-resident
            pl.BlockSpec((IN_DIM, OUT_DIM), lambda i: (0, 0)),   # w2 VMEM-resident
            pl.BlockSpec((1, OUT_DIM), lambda i: (0, 0)),        # b2 VMEM-resident
        ],
        out_specs=pl.BlockSpec((tb, OUT_DIM), lambda i: (i, 0)),
        compiler_params=pltpu.CompilerParams(
            dimension_semantics=("parallel",)),
    )(fx, fi, w1, b1_2d, w2, b2_2d)


def reference(fx, fi, w1, b1, w2, b2):
    zx = jnp.tanh(fx @ w1 + b1)
    zi = jnp.tanh(fi @ w2 + b2)
    return zx * zi


if __name__ == "__main__":
    key = jax.random.PRNGKey(0)
    k_fx, k_fi, k_w1, k_b1, k_w2, k_b2 = jax.random.split(key, 6)

    # Deterministic init mimicking nn.Linear's uniform(-1/sqrt(36), 1/sqrt(36)).
    bound = 1.0 / float(IN_DIM) ** 0.5
    w1 = jax.random.uniform(k_w1, (IN_DIM, OUT_DIM), jnp.float32, -bound, bound)
    b1 = jax.random.uniform(k_b1, (OUT_DIM,), jnp.float32, -bound, bound)
    w2 = jax.random.uniform(k_w2, (IN_DIM, OUT_DIM), jnp.float32, -bound, bound)
    b2 = jax.random.uniform(k_b2, (OUT_DIM,), jnp.float32, -bound, bound)

    # Small demo batch (matches the module's forward).
    batch = 8
    fx = jax.random.normal(k_fx, (batch, IN_DIM), dtype=jnp.float32)
    fi = jax.random.normal(k_fi, (batch, IN_DIM), dtype=jnp.float32)

    out = my_dbl(fx, fi, w1, b1, w2, b2)
    jax.block_until_ready(out)
    ref = reference(fx, fi, w1, b1, w2, b2)
    assert out.shape == (batch, OUT_DIM)
    # f32 compute, bf16 output store -> loosened tolerance.
    assert jnp.allclose(out.astype(jnp.float32), ref, atol=2e-2, rtol=2e-2)

    # Exercise the multi-tile grid with a masked partial trailing block.
    big = 10000
    fx_b = jax.random.normal(k_fx, (big, IN_DIM), dtype=jnp.float32)
    fi_b = jax.random.normal(k_fi, (big, IN_DIM), dtype=jnp.float32)
    out_b = my_dbl(fx_b, fi_b, w1, b1, w2, b2)
    jax.block_until_ready(out_b)
    ref_b = reference(fx_b, fi_b, w1, b1, w2, b2)
    assert out_b.shape == (big, OUT_DIM)
    assert jnp.allclose(out_b.astype(jnp.float32), ref_b, atol=2e-2, rtol=2e-2)

    print("KERNEL_OK")
</pallas_src>

<mosaic_0001>
module attributes {stable_mosaic.version = 11 : i64} {
  func.func @dbl_kernel(%arg0: i32, %arg1: memref<8x36xf32, #tpu.memory_space<vmem>>, %arg2: memref<8x36xf32, #tpu.memory_space<vmem>>, %arg3: memref<36x24xf32, #tpu.memory_space<vmem>>, %arg4: memref<1x24xf32, #tpu.memory_space<vmem>>, %arg5: memref<36x24xf32, #tpu.memory_space<vmem>>, %arg6: memref<1x24xf32, #tpu.memory_space<vmem>>, %arg7: memref<8x24xbf16, #tpu.memory_space<vmem>>) attributes {dimension_semantics = [#tpu.dimension_semantics<parallel>], iteration_bounds = array<i64: 1>, scalar_prefetch = 0 : i64, scratch_operands = 0 : i64, tpu.core_type = #tpu.core_type<tc>, window_params = [{transform_indices = @transform_0, window_bounds = array<i64: 8, 36>}, {transform_indices = @transform_1, window_bounds = array<i64: 8, 36>}, {pipeline_mode = #tpu.pipeline_mode<synchronous>, transform_indices = @transform_2, window_bounds = array<i64: 36, 24>}, {pipeline_mode = #tpu.pipeline_mode<synchronous>, transform_indices = @transform_3, window_bounds = array<i64: 1, 24>}, {pipeline_mode = #tpu.pipeline_mode<synchronous>, transform_indices = @transform_4, window_bounds = array<i64: 36, 24>}, {pipeline_mode = #tpu.pipeline_mode<synchronous>, transform_indices = @transform_5, window_bounds = array<i64: 1, 24>}, {transform_indices = @transform_6, window_bounds = array<i64: 8, 24>}]} {
    %c0 = arith.constant 0 : index
    %c0_0 = arith.constant 0 : index
    %0 = vector.load %arg1[%c0, %c0_0] : memref<8x36xf32, #tpu.memory_space<vmem>>, vector<8x36xf32>
    %c0_1 = arith.constant 0 : index
    %c0_2 = arith.constant 0 : index
    %1 = vector.load %arg3[%c0_1, %c0_2] : memref<36x24xf32, #tpu.memory_space<vmem>>, vector<36x24xf32>
    %cst = arith.constant dense<0.000000e+00> : vector<8x24xf32>
    %2 = tpu.matmul %0, %1, %cst {dimension_numbers = #tpu.dot_dimension_numbers<[1], [0], [0], [1], [0, 0, 1, 1], [], []>} : vector<8x36xf32>, vector<36x24xf32>, vector<8x24xf32> -> vector<8x24xf32>
    %c0_3 = arith.constant 0 : index
    %c0_4 = arith.constant 0 : index
    %3 = vector.load %arg4[%c0_3, %c0_4] : memref<1x24xf32, #tpu.memory_space<vmem>>, vector<1x24xf32>
    %4 = vector.broadcast %3 : vector<1x24xf32> to vector<8x24xf32>
    %5 = arith.addf %2, %4 : vector<8x24xf32>
    %6 = math.tanh %5 : vector<8x24xf32>
    %c0_5 = arith.constant 0 : index
    %c0_6 = arith.constant 0 : index
    %7 = vector.load %arg2[%c0_5, %c0_6] : memref<8x36xf32, #tpu.memory_space<vmem>>, vector<8x36xf32>
    %c0_7 = arith.constant 0 : index
    %c0_8 = arith.constant 0 : index
    %8 = vector.load %arg5[%c0_7, %c0_8] : memref<36x24xf32, #tpu.memory_space<vmem>>, vector<36x24xf32>
    %cst_9 = arith.constant dense<0.000000e+00> : vector<8x24xf32>
    %9 = tpu.matmul %7, %8, %cst_9 {dimension_numbers = #tpu.dot_dimension_numbers<[1], [0], [0], [1], [0, 0, 1, 1], [], []>} : vector<8x36xf32>, vector<36x24xf32>, vector<8x24xf32> -> vector<8x24xf32>
    %c0_10 = arith.constant 0 : index
    %c0_11 = arith.constant 0 : index
    %10 = vector.load %arg6[%c0_10, %c0_11] : memref<1x24xf32, #tpu.memory_space<vmem>>, vector<1x24xf32>
    %11 = vector.broadcast %10 : vector<1x24xf32> to vector<8x24xf32>
    %12 = arith.addf %9, %11 : vector<8x24xf32>
    %13 = math.tanh %12 : vector<8x24xf32>
    %14 = arith.mulf %6, %13 : vector<8x24xf32>
    %15 = arith.truncf %14 : vector<8x24xf32> to vector<8x24xbf16>
    %c0_12 = arith.constant 0 : index
    %c0_13 = arith.constant 0 : index
    %16 = vector.load %arg7[%c0_12, %c0_13] : memref<8x24xbf16, #tpu.memory_space<vmem>>, vector<8x24xbf16>
    tpu.vector_store %arg7[%c0_12, %c0_13], %15 {strides = array<i32>} : memref<8x24xbf16, #tpu.memory_space<vmem>>, vector<8x24xbf16>,
    return
  }
  func.func @transform_0(%arg0: i32) -> (i32, i32) {
    %c0_i32 = arith.constant 0 : i32
    %c0_i32_0 = arith.constant 0 : i32
    return %arg0, %c0_i32 : i32, i32
  }
  func.func @transform_1(%arg0: i32) -> (i32, i32) {
    %c0_i32 = arith.constant 0 : i32
    %c0_i32_0 = arith.constant 0 : i32
    return %arg0, %c0_i32 : i32, i32
  }
  func.func @transform_2(%arg0: i32) -> (i32, i32) {
    %c0_i32 = arith.constant 0 : i32
    %c0_i32_0 = arith.constant 0 : i32
    %c0_i32_1 = arith.constant 0 : i32
    return %c0_i32, %c0_i32_0 : i32, i32
  }
  func.func @transform_3(%arg0: i32) -> (i32, i32) {
    %c0_i32 = arith.constant 0 : i32
    %c0_i32_0 = arith.constant 0 : i32
    %c0_i32_1 = arith.constant 0 : i32
    return %c0_i32, %c0_i32_0 : i32, i32
  }
  func.func @transform_4(%arg0: i32) -> (i32, i32) {
    %c0_i32 = arith.constant 0 : i32
    %c0_i32_0 = arith.constant 0 : i32
    %c0_i32_1 = arith.constant 0 : i32
    return %c0_i32, %c0_i32_0 : i32, i32
  }
  func.func @transform_5(%arg0: i32) -> (i32, i32) {
    %c0_i32 = arith.constant 0 : i32
    %c0_i32_0 = arith.constant 0 : i32
    %c0_i32_1 = arith.constant 0 : i32
    return %c0_i32, %c0_i32_0 : i32, i32
  }
  func.func @transform_6(%arg0: i32) -> (i32, i32) {
    %c0_i32 = arith.constant 0 : i32
    %c0_i32_0 = arith.constant 0 : i32
    return %arg0, %c0_i32 : i32, i32
  }
}

</mosaic_0001>

<llo_original>
// kernel: my_dbl.1
$region0: #{my_dbl.1}
  #allocation0 [shape = 'u32[]', space=smem, size = 0x4, offset = 0x4, fixed_abs, tag = 'smem constant byte address 0x4 - core index']
  #allocation1 [shape = 'u32[72,128]{1,0:T(1,128)}', space=vmem, size = 0x9000, scoped, tag = 'internal scratch']
  %s0 = inlined_call_operand.vmem [shape: f32[8,36], index: 0, kind: input, shape index: {}]
  %s1 = inlined_call_operand.vmem [shape: f32[8,36], index: 1, kind: input, shape index: {}]
  %s2 = inlined_call_operand.vmem [shape: f32[36,24], index: 2, kind: input, shape index: {}]
  %s3 = inlined_call_operand.vmem [shape: f32[1,24], index: 3, kind: input, shape index: {}]
  %s4 = inlined_call_operand.vmem [shape: f32[36,24], index: 4, kind: input, shape index: {}]
  %s5 = inlined_call_operand.vmem [shape: f32[1,24], index: 5, kind: input, shape index: {}]
  %s6 = inlined_call_operand.hbm [shape: bf16[8,24], index: 6, kind: output, shape index: {}]
  %s7 = sld [smem:[#allocation0]]
  $region34: #{my_dbl.1} parent=0
    _
  %s9 = ssub.s32 1, %s7
  %s10 = scalar_select 0, %s9, %s7
  $region1: #{my_dbl.1} parent=0
    #allocation2 [shape = 'u8[2048]{0}', space=vmem, size = 0x800, scoped, tag = 'output window, operand 0, single buffered']
    #allocation3 [shape = 's32[1]{0}', space=sflag, size = 0x4, scoped, tag = 'scoped memory for my_dbl.1']
    %11 = vsyncpa [#allocation3], 0
    // Predicated region
    $region2: #{my_dbl.1} parent=1 // pred_check
      _
    $region3: #{my_dbl.1} parent=1 // pred_check_branch
      %13 = sbr.rel (0) target = $region5
    $region4: #{my_dbl.1} parent=1 // pred_region
      _
    $region5: #{my_dbl.1} parent=1 // pred_fallthru
      _
    // Predicated region
    $region6: #{my_dbl.1} parent=1 // pred_check
      _
    $region7: #{my_dbl.1} parent=1 // pred_check_branch
      %15 = sbr.rel (0) target = $region9
    $region8: #{my_dbl.1} parent=1 // pred_region
      _
    $region9: #{my_dbl.1} parent=1 // pred_fallthru
      _
    // Predicated region
    $region10: #{my_dbl.1} parent=1 // pred_check
      _
    $region11: #{my_dbl.1} parent=1 // pred_check_branch
      %17 = sbr.rel (0) target = $region13
    $region12: #{my_dbl.1} parent=1 // pred_region
      _
    $region13: #{my_dbl.1} parent=1 // pred_fallthru
      _
    // Predicated region
    $region14: #{my_dbl.1} parent=1 // pred_check
      _
    $region15: #{my_dbl.1} parent=1 // pred_check_branch
      %19 = sbr.rel (0) target = $region17
    $region16: #{my_dbl.1} parent=1 // pred_region
      _
    $region17: #{my_dbl.1} parent=1 // pred_fallthru
      _
    // Predicated region
    $region18: #{my_dbl.1} parent=1 // pred_check
      _
    $region19: #{my_dbl.1} parent=1 // pred_check_branch
      %21 = sbr.rel (0) target = $region21
    $region20: #{my_dbl.1} parent=1 // pred_region
      _
    $region21: #{my_dbl.1} parent=1 // pred_fallthru
      _
    // Predicated region
    $region22: #{my_dbl.1} parent=1 // pred_check
      _
    $region23: #{my_dbl.1} parent=1 // pred_check_branch
      %23 = sbr.rel (0) target = $region25
    $region24: #{my_dbl.1} parent=1 // pred_region
      _
    $region25: #{my_dbl.1} parent=1 // pred_fallthru
      _
    %v24 = vld [vmem:[%s0] sm:$0xff]
    %v25 = vld [vmem:[%s2] sm:$0xff]
    %v26 = vld [vmem:[%s2 + $0x8] sm:$0xff]
    %v27 = vld [vmem:[%s2 + $0x10] sm:$0xff]
    %v28 = vld [vmem:[%s2 + $0x18] sm:$0xff]
    %v29 = vld [vmem:[%s2 + $0x20] sm:$0xf]
    %v30 = vld [vmem:[%s3] sm:$0x1]
    %v32 = vperm.slane %v30, 0
    %vm34 = vcmask 293888
    %v36 = vsel %vm34, %v24, 0
    %vm38 = vcmask 1043456
    %v40 = vsel %vm38, %v29, 0
    %42 = vmatpush.msra.mxu0 0.0
    %43 = vmatpush.msra.mxu0 0.0
    %44 = vmatpush.msra.mxu0 0.0
    %45 = vmatpush.msra.mxu0 0.0
    %46 = vmatpush.msra.mxu0 0.0
    %47 = vmatpush.msra.mxu0 0.0
    %48 = vmatpush.msra.mxu0 0.0
    %49 = vmatpush.msra.mxu0 0.0
    %50 = vmatpush.msra.mxu0 0.0
    %51 = vmatpush.msra.mxu0 0.0
    %52 = vmatpush.msra.mxu0 0.0
    %53 = vmatpush.msra.mxu0 %v40
    %54 = vmatpush.msra.mxu0 %v28
    %55 = vmatpush.msra.mxu0 %v27
    %56 = vmatpush.msra.mxu0 %v26
    %57 = vmatpush.msra.mxu0 %v25
    %58 = vmatmul.f32.gmra.mxu0 %v36
    %v59 = vpop.f32.mrf.mxu0
    %v60 = vadd.f32 %v32, %v59
    %61 = vdwg.mxu0
    %v62 = vtanh.pop %v60
    %v63 = vld [vmem:[%s1] sm:$0xff]
    %v64 = vld [vmem:[%s4] sm:$0xff]
    %v65 = vld [vmem:[%s4 + $0x8] sm:$0xff]
    %v66 = vld [vmem:[%s4 + $0x10] sm:$0xff]
    %v67 = vld [vmem:[%s4 + $0x18] sm:$0xff]
    %v68 = vld [vmem:[%s4 + $0x20] sm:$0xf]
    %v69 = vld [vmem:[%s5] sm:$0x1]
    %v71 = vperm.slane %v69, 0
    %v74 = vsel %vm34, %v63, 0
    %v77 = vsel %vm38, %v68, 0
    %79 = vmatpush.msra.mxu0 0.0
    %80 = vmatpush.msra.mxu0 0.0
    %81 = vmatpush.msra.mxu0 0.0
    %82 = vmatpush.msra.mxu0 0.0
    %83 = vmatpush.msra.mxu0 0.0
    %84 = vmatpush.msra.mxu0 0.0
    %85 = vmatpush.msra.mxu0 0.0
    %86 = vmatpush.msra.mxu0 0.0
    %87 = vmatpush.msra.mxu0 0.0
    %88 = vmatpush.msra.mxu0 0.0
    %89 = vmatpush.msra.mxu0 0.0
    %90 = vmatpush.msra.mxu0 %v77
    %91 = vmatpush.msra.mxu0 %v67
    %92 = vmatpush.msra.mxu0 %v66
    %93 = vmatpush.msra.mxu0 %v65
    %94 = vmatpush.msra.mxu0 %v64
    %95 = vmatmul.f32.gmra.mxu0 %v74
    %v96 = vpop.f32.mrf.mxu0
    %v97 = vadd.f32 %v71, %v96
    %98 = vdwg.mxu0
    %v99 = vtanh.pop %v97
    %v100 = vmul.f32 %v62, %v99
    %v101 = vpack.c.bf16 %v100, %v100
    %vm102 = vcmask 191488
    %103 = vst.msk [vmem:[#allocation2] sm:$0xf] %vm102, %v101
    // Predicated region
    $region26: #{my_dbl.1} parent=1 // pred_check
      _
    $region27: #{my_dbl.1} parent=1 // pred_check_branch
      %105 = sbr.rel (0) target = $region29
    $region28: #{my_dbl.1} parent=1 // pred_region
      %107 = vsyncadd [#allocation3], 0
      %s109 = sshll.u32 [#allocation2], 4
      %s110 = int_to_ptr.vmem [resolvable:$true] %s109
      %s111 = sshll.u32 %s6, 4
      %s112 = int_to_ptr.hbm [resolvable:$true] %s111
      %114 = dma.vmem_to_hbm [thread:$0]  %s110, 64, %s112, [#allocation3]
    $region29: #{my_dbl.1} parent=1 // pred_fallthru
      _
    // Predicated region
    $region30: #{my_dbl.1} parent=1 // pred_check
      _
    $region31: #{my_dbl.1} parent=1 // pred_check_branch
      %116 = sbr.rel (0) target = $region33
    $region32: #{my_dbl.1} parent=1 // pred_region
      %118 = dma.done [#allocation3], 64
    $region33: #{my_dbl.1} parent=1 // pred_fallthru
      _
    %119 = vsyncpa [#allocation3], 1

</llo_original>
